<compile_context>
chip_gen: v5e
topology: v5e:2x2
jax: 0.10.0
libtpu: 0.0.40
codegen_flags: <defaults>
</compile_context>

<pallas_src>
import functools
import numpy as np
import jax
import jax.numpy as jnp
from jax import lax
from jax.experimental import pallas as pl
from jax.experimental.pallas import tpu as pltpu

EXPANSION = 4
BN_EPS = 1e-5


def _bottleneck_kernel(W, stride, has_projection,
                       x_ref, w1_ref, b1_ref, w2_ref, b2_ref, w3_ref, b3_ref,
                       mask_ref, *rest):
    """One batch-block per grid step; channels on sublanes, pixels on lanes.

    Per step (P = planes, C4 = 4*planes, N = bblk*H*W, No = bblk*Ho*Wo):
      x_ref    : [Cin, N]
      w1_ref   : [P,  Cin]   b1_ref : [P, 1]    (BN1 scale folded into w1)
      w2_ref   : [P,  9P]    b2_ref : [P, 1]    (BN2 scale folded into w2)
      w3_ref   : [C4, P]     b3_ref : [C4, 1]   (BN3 scale folded into w3)
      mask_ref : [9P, N]     per-tap spatial validity (realizes zero padding)
      wsc/bsc  : [C4, Cin] / [C4, 1]            (projection shortcut, BN folded)
      xs_ref   : [Cin, No]   strided x for the projection shortcut (stride > 1)
      sel_ref  : [N, No]     one-hot stride-subsample matrix     (stride > 1)
      o1 [P, N], o2 [P, No], o3 [C4, No]
    """
    idx = 0
    if has_projection:
        wsc_ref, bsc_ref = rest[idx], rest[idx + 1]
        idx += 2
        if stride > 1:
            xs_ref = rest[idx]
            idx += 1
    if stride > 1:
        sel_ref = rest[idx]
        idx += 1
    o1_ref, o2_ref, o3_ref = rest[idx], rest[idx + 1], rest[idx + 2]

    f32 = jnp.float32
    x = x_ref[...]                                             # [Cin, N]
    N = x.shape[1]

    # ---- stage 1: 1x1 conv (+folded BN) + ReLU  (quant1 == identity) -------
    a1 = jnp.dot(w1_ref[...], x, preferred_element_type=f32) + b1_ref[...]
    a1 = jnp.maximum(a1, 0.0)                                  # [P, N]
    o1_ref[...] = a1.astype(o1_ref.dtype)

    # ---- stage 2: 3x3 conv (pad=1) as ONE im2col matmul ---------------------
    # Each tap is an XLU lane-rotation of a1 by the flattened spatial offset;
    # padding / cross-image wraparound is zeroed by one precomputed mask mul.
    taps = []
    for ky in range(3):
        for kx in range(3):
            d = (ky - 1) * W + (kx - 1)
            taps.append(a1 if d == 0 else pltpu.roll(a1, (-d) % N, axis=1))
    im2col = jnp.concatenate(taps, axis=0) * mask_ref[...]     # [9P, N]
    acc2 = jnp.dot(w2_ref[...], im2col, preferred_element_type=f32)   # [P, N]
    if stride > 1:
        # strided conv == stride-1 conv subsampled; `sel` is a one-hot
        # column-selection matrix so the lane-gather stays on the MXU.
        acc2 = jnp.dot(acc2, sel_ref[...], preferred_element_type=f32)  # [P, No]
    a2 = jnp.maximum(acc2 + b2_ref[...], 0.0)
    o2_ref[...] = a2.astype(o2_ref.dtype)

    # ---- stage 3: 1x1 conv (+folded BN), shortcut, residual add, ReLU -------
    y3 = jnp.dot(w3_ref[...], a2, preferred_element_type=f32) + b3_ref[...]
    if has_projection:
        xs = xs_ref[...] if stride > 1 else x
        sc = jnp.dot(wsc_ref[...], xs, preferred_element_type=f32) + bsc_ref[...]
    else:
        sc = x
    o3_ref[...] = jnp.maximum(y3 + sc, 0.0).astype(o3_ref.dtype)


def _fold_bn(gamma, beta, mean, var, eps=BN_EPS):
    scale = gamma / jnp.sqrt(var + eps)
    shift = beta - mean * scale
    return scale, shift


def prepare_bottleneck_params(torch_params, in_planes, planes, stride):
    """One-time prep: PyTorch layouts -> kernel layouts, BN folded into convs."""
    P = planes
    cexp = EXPANSION * planes
    has_projection = (stride != 1) or (in_planes != cexp)

    def fold(prefix):
        return _fold_bn(jnp.asarray(torch_params[prefix + '_gamma']),
                        jnp.asarray(torch_params[prefix + '_beta']),
                        jnp.asarray(torch_params[prefix + '_mean']),
                        jnp.asarray(torch_params[prefix + '_var']))

    s1, t1 = fold('bn1')
    s2, t2 = fold('bn2')
    s3, t3 = fold('bn3')

    w1 = jnp.asarray(torch_params['conv1_w']).reshape(P, in_planes)       # [P, Cin]
    w2 = jnp.asarray(torch_params['conv2_w'])                             # [P, P, 3, 3] (OIHW)
    # column index = (ky*3 + kx)*P + c_in   (matches the im2col row order)
    w2 = jnp.transpose(w2, (0, 2, 3, 1)).reshape(P, 9 * P)                # [P, 9P]
    w3 = jnp.asarray(torch_params['conv3_w']).reshape(cexp, P)            # [4P, P]

    kp = dict(w1=w1 * s1[:, None], b1=t1[:, None],
              w2=w2 * s2[:, None], b2=t2[:, None],
              w3=w3 * s3[:, None], b3=t3[:, None],
              has_projection=has_projection)
    if has_projection:
        ssc, tsc = fold('sc_bn')
        wsc = jnp.asarray(torch_params['sc_conv_w']).reshape(cexp, in_planes)
        kp.update(wsc=wsc * ssc[:, None], bsc=tsc[:, None])
    return kp


def bottleneck_forward(x_nchw, kparams, *, stride=1, iden='na', bblk=None):
    """x_nchw: [B, Cin, H, W] float32 (the PyTorch module takes x as a 1-tuple;
    a tuple/list is also accepted).  Returns (out [B,4P,Ho,Wo], results)."""
    if isinstance(x_nchw, (tuple, list)):
        x_nchw = x_nchw[0]
    B, cin, H, W = x_nchw.shape
    P = kparams['w1'].shape[0]
    cexp = EXPANSION * P
    HW = H * W
    Ho = (H - 1) // stride + 1
    Wo = (W - 1) // stride + 1
    HoWo = Ho * Wo
    has_projection = bool(kparams['has_projection'])

    if bblk is None:
        bblk = next(d for d in (8, 4, 2, 1) if B % d == 0)   # amortize step overhead
    assert B % bblk == 0
    nblk = B // bblk
    N = bblk * HW
    No = bblk * HoWo

    # Lane-dense layout: [C, B*H*W] (pixels on the 128-lane axis).  Pure
    # wrapper-side XLA transposes, done once per call.
    x_cl = jnp.transpose(x_nchw, (1, 0, 2, 3)).reshape(cin, B * HW)

    # Per-tap validity mask (zero padding + kills cross-image roll leakage),
    # pre-expanded to im2col rows so the kernel does a single multiply.
    base = np.zeros((9, HW), np.float32)
    for ky in range(3):
        for kx in range(3):
            t = ky * 3 + kx
            for i in range(H):
                for j in range(W):
                    if 0 <= i + ky - 1 < H and 0 <= j + kx - 1 < W:
                        base[t, i * W + j] = 1.0
    mask = np.repeat(np.tile(base, (1, bblk)), P, axis=0)                 # [9P, N]

    def const(shape):
        nd = len(shape)
        return pl.BlockSpec(shape, lambda g, _nd=nd: (0,) * _nd)

    inputs = [x_cl, kparams['w1'], kparams['b1'], kparams['w2'], kparams['b2'],
              kparams['w3'], kparams['b3'], jnp.asarray(mask)]
    in_specs = [pl.BlockSpec((cin, N), lambda g: (0, g)),
                const((P, cin)), const((P, 1)),
                const((P, 9 * P)), const((P, 1)),
                const((cexp, P)), const((cexp, 1)),
                const((9 * P, N))]
    if has_projection:
        inputs += [kparams['wsc'], kparams['bsc']]
        in_specs += [const((cexp, cin)), const((cexp, 1))]
        if stride > 1:
            # strided 1x1 shortcut input: slice in the wrapper (no sel matmul)
            xs_cl = jnp.transpose(x_nchw[:, :, ::stride, ::stride],
                                  (1, 0, 2, 3)).reshape(cin, B * HoWo)
            inputs.append(xs_cl)
            in_specs.append(pl.BlockSpec((cin, No), lambda g: (0, g)))
    if stride > 1:
        sel = np.zeros((N, No), np.float32)
        for b in range(bblk):
            for io in range(Ho):
                for jo in range(Wo):
                    sel[b * HW + io * stride * W + jo * stride,
                        b * HoWo + io * Wo + jo] = 1.0
        inputs.append(jnp.asarray(sel))
        in_specs.append(const((N, No)))

    out_shape = (jax.ShapeDtypeStruct((P, B * HW), x_nchw.dtype),
                 jax.ShapeDtypeStruct((P, B * HoWo), x_nchw.dtype),
                 jax.ShapeDtypeStruct((cexp, B * HoWo), x_nchw.dtype))
    out_specs = (pl.BlockSpec((P, N), lambda g: (0, g)),
                 pl.BlockSpec((P, No), lambda g: (0, g)),
                 pl.BlockSpec((cexp, No), lambda g: (0, g)))

    flops = 2 * B * (HW * cin * P + HW * 9 * P * P + HoWo * P * cexp
                     + (HoWo * cin * cexp if has_projection else 0)
                     + (HW * HoWo * P if stride > 1 else 0))
    bytes_accessed = int(sum(int(np.prod(a.shape)) * 4 for a in inputs)
                         + 4 * (B * HW * P + B * HoWo * P + B * HoWo * cexp))

    kernel = functools.partial(_bottleneck_kernel, W, stride, has_projection)
    o1, o2, o3 = pl.pallas_call(
        kernel,
        out_shape=out_shape,
        grid=(nblk,),
        in_specs=in_specs,
        out_specs=out_specs,
        compiler_params=pltpu.CompilerParams(dimension_semantics=("parallel",)),
        cost_estimate=pl.CostEstimate(flops=flops, transcendentals=0,
                                      bytes_accessed=bytes_accessed),
    )(*inputs)

    out1 = jnp.transpose(o1.reshape(P, B, H, W), (1, 0, 2, 3))
    out2 = jnp.transpose(o2.reshape(P, B, Ho, Wo), (1, 0, 2, 3))
    out = jnp.transpose(o3.reshape(cexp, B, Ho, Wo), (1, 0, 2, 3))
    results = {f"{iden}0": out1, f"{iden}1": out2, f"{iden}2": out}
    return out, results


# ---------------------------- pure-JAX reference ----------------------------

def _conv2d_nchw(x, w_oihw, stride, pad):
    return lax.conv_general_dilated(
        x, w_oihw, window_strides=(stride, stride),
        padding=[(pad, pad), (pad, pad)],
        dimension_numbers=('NCHW', 'OIHW', 'NCHW'),
        precision=lax.Precision.HIGHEST)


def bottleneck_reference(x_nchw, tp, in_planes, planes, stride):
    def bn(y, prefix):
        g = tp[prefix + '_gamma'][None, :, None, None]
        b = tp[prefix + '_beta'][None, :, None, None]
        m = tp[prefix + '_mean'][None, :, None, None]
        v = tp[prefix + '_var'][None, :, None, None]
        return (y - m) / jnp.sqrt(v + BN_EPS) * g + b

    out1 = jax.nn.relu(bn(_conv2d_nchw(x_nchw, tp['conv1_w'], 1, 0), 'bn1'))
    out2 = jax.nn.relu(bn(_conv2d_nchw(out1, tp['conv2_w'], stride, 1), 'bn2'))
    y3 = bn(_conv2d_nchw(out2, tp['conv3_w'], 1, 0), 'bn3')
    if stride != 1 or in_planes != EXPANSION * planes:
        sc = bn(_conv2d_nchw(x_nchw, tp['sc_conv_w'], stride, 0), 'sc_bn')
    else:
        sc = x_nchw
    return out1, out2, jax.nn.relu(y3 + sc)


def make_torch_style_params(key, in_planes, planes, stride):
    cexp = EXPANSION * planes
    has_projection = (stride != 1) or (in_planes != cexp)
    keys = iter(jax.random.split(key, 32))

    def conv_w(shape):
        fan_in = shape[1] * shape[2] * shape[3]
        return jax.random.normal(next(keys), shape, jnp.float32) * np.sqrt(2.0 / fan_in)

    def bn_params(c):
        return (jax.random.uniform(next(keys), (c,), jnp.float32, 0.5, 1.5),
                0.1 * jax.random.normal(next(keys), (c,), jnp.float32),
                0.1 * jax.random.normal(next(keys), (c,), jnp.float32),
                jax.random.uniform(next(keys), (c,), jnp.float32, 0.5, 1.5))

    tp = {'conv1_w': conv_w((planes, in_planes, 1, 1))}
    tp['bn1_gamma'], tp['bn1_beta'], tp['bn1_mean'], tp['bn1_var'] = bn_params(planes)
    tp['conv2_w'] = conv_w((planes, planes, 3, 3))
    tp['bn2_gamma'], tp['bn2_beta'], tp['bn2_mean'], tp['bn2_var'] = bn_params(planes)
    tp['conv3_w'] = conv_w((cexp, planes, 1, 1))
    tp['bn3_gamma'], tp['bn3_beta'], tp['bn3_mean'], tp['bn3_var'] = bn_params(cexp)
    if has_projection:
        tp['sc_conv_w'] = conv_w((cexp, in_planes, 1, 1))
        (tp['sc_bn_gamma'], tp['sc_bn_beta'],
         tp['sc_bn_mean'], tp['sc_bn_var']) = bn_params(cexp)
    return tp


if __name__ == "__main__":
    key = jax.random.PRNGKey(0)
    B, H, W = 2, 16, 16

    configs = [
        (16, 8, 1),   # projection shortcut (Cin != 4*planes), stride 1
        (32, 8, 1),   # identity shortcut
        (32, 8, 2),   # strided block with projection shortcut
    ]

    for cfg_i, (in_planes, planes, stride) in enumerate(configs):
        k_x, k_p, key = jax.random.split(key, 3)
        x = jax.random.normal(k_x, (B, in_planes, H, W), jnp.float32)   # NCHW
        tp = make_torch_style_params(k_p, in_planes, planes, stride)
        kp = prepare_bottleneck_params(tp, in_planes, planes, stride)

        iden = f"blk{cfg_i}_"
        out, results = bottleneck_forward(x, kp, stride=stride, iden=iden)
        out = jax.block_until_ready(out)

        r1, r2, r3 = bottleneck_reference(x, tp, in_planes, planes, stride)
        checks = ((results[iden + "0"], r1), (results[iden + "1"], r2), (out, r3))
        for got, want in checks:
            assert got.shape == want.shape, (cfg_i, got.shape, want.shape)
            # tolerance documents default (non-HIGHEST) MXU matmul precision
            assert jnp.allclose(got, want, atol=2e-3, rtol=2e-3), (
                cfg_i, float(jnp.max(jnp.abs(got - want))))

    print("KERNEL_OK")
</pallas_src>

<mosaic_0001>
module attributes {stable_mosaic.version = 11 : i64} {
  func.func @_bottleneck_kernel(%arg0: i32, %arg1: memref<16x512xf32, #tpu.memory_space<vmem>>, %arg2: memref<8x16xf32, #tpu.memory_space<vmem>>, %arg3: memref<8x1xf32, #tpu.memory_space<vmem>>, %arg4: memref<8x72xf32, #tpu.memory_space<vmem>>, %arg5: memref<8x1xf32, #tpu.memory_space<vmem>>, %arg6: memref<32x8xf32, #tpu.memory_space<vmem>>, %arg7: memref<32x1xf32, #tpu.memory_space<vmem>>, %arg8: memref<72x512xf32, #tpu.memory_space<vmem>>, %arg9: memref<32x16xf32, #tpu.memory_space<vmem>>, %arg10: memref<32x1xf32, #tpu.memory_space<vmem>>, %arg11: memref<8x512xf32, #tpu.memory_space<vmem>>, %arg12: memref<8x512xf32, #tpu.memory_space<vmem>>, %arg13: memref<32x512xf32, #tpu.memory_space<vmem>>) attributes {dimension_semantics = [#tpu.dimension_semantics<parallel>], iteration_bounds = array<i64: 1>, scalar_prefetch = 0 : i64, scratch_operands = 0 : i64, tpu.core_type = #tpu.core_type<tc>, window_params = [{transform_indices = @transform_0, window_bounds = array<i64: 16, 512>}, {pipeline_mode = #tpu.pipeline_mode<synchronous>, transform_indices = @transform_1, window_bounds = array<i64: 8, 16>}, {pipeline_mode = #tpu.pipeline_mode<synchronous>, transform_indices = @transform_2, window_bounds = array<i64: 8, 1>}, {pipeline_mode = #tpu.pipeline_mode<synchronous>, transform_indices = @transform_3, window_bounds = array<i64: 8, 72>}, {pipeline_mode = #tpu.pipeline_mode<synchronous>, transform_indices = @transform_4, window_bounds = array<i64: 8, 1>}, {pipeline_mode = #tpu.pipeline_mode<synchronous>, transform_indices = @transform_5, window_bounds = array<i64: 32, 8>}, {pipeline_mode = #tpu.pipeline_mode<synchronous>, transform_indices = @transform_6, window_bounds = array<i64: 32, 1>}, {pipeline_mode = #tpu.pipeline_mode<synchronous>, transform_indices = @transform_7, window_bounds = array<i64: 72, 512>}, {pipeline_mode = #tpu.pipeline_mode<synchronous>, transform_indices = @transform_8, window_bounds = array<i64: 32, 16>}, {pipeline_mode = #tpu.pipeline_mode<synchronous>, transform_indices = @transform_9, window_bounds = array<i64: 32, 1>}, {transform_indices = @transform_10, window_bounds = array<i64: 8, 512>}, {transform_indices = @transform_11, window_bounds = array<i64: 8, 512>}, {transform_indices = @transform_12, window_bounds = array<i64: 32, 512>}]} {
    %c0 = arith.constant 0 : index
    %c0_0 = arith.constant 0 : index
    %0 = vector.load %arg1[%c0, %c0_0] : memref<16x512xf32, #tpu.memory_space<vmem>>, vector<16x512xf32>
    %c0_1 = arith.constant 0 : index
    %c0_2 = arith.constant 0 : index
    %1 = vector.load %arg2[%c0_1, %c0_2] : memref<8x16xf32, #tpu.memory_space<vmem>>, vector<8x16xf32>
    %cst = arith.constant dense<0.000000e+00> : vector<8x512xf32>
    %2 = tpu.matmul %1, %0, %cst {dimension_numbers = #tpu.dot_dimension_numbers<[1], [0], [0], [1], [0, 0, 1, 1], [], []>} : vector<8x16xf32>, vector<16x512xf32>, vector<8x512xf32> -> vector<8x512xf32>
    %c0_3 = arith.constant 0 : index
    %c0_4 = arith.constant 0 : index
    %3 = vector.load %arg3[%c0_3, %c0_4] : memref<8x1xf32, #tpu.memory_space<vmem>>, vector<8x1xf32>
    %4 = vector.broadcast %3 : vector<8x1xf32> to vector<8x512xf32>
    %5 = arith.addf %2, %4 : vector<8x512xf32>
    %cst_5 = arith.constant 0.000000e+00 : f32
    %6 = vector.broadcast %cst_5 : f32 to vector<8x512xf32>
    %7 = arith.maximumf %5, %6 : vector<8x512xf32>
    %c0_6 = arith.constant 0 : index
    %c0_7 = arith.constant 0 : index
    %8 = vector.load %arg11[%c0_6, %c0_7] : memref<8x512xf32, #tpu.memory_space<vmem>>, vector<8x512xf32>
    tpu.vector_store %arg11[%c0_6, %c0_7], %7 {strides = array<i32>} : memref<8x512xf32, #tpu.memory_space<vmem>>, vector<8x512xf32>,
    %c17_i32 = arith.constant 17 : i32
    %9 = tpu.dynamic_rotate %7 by %c17_i32 dim 1 : vector<8x512xf32>, i32 -> vector<8x512xf32>
    %c16_i32 = arith.constant 16 : i32
    %10 = tpu.dynamic_rotate %7 by %c16_i32 dim 1 : vector<8x512xf32>, i32 -> vector<8x512xf32>
    %c15_i32 = arith.constant 15 : i32
    %11 = tpu.dynamic_rotate %7 by %c15_i32 dim 1 : vector<8x512xf32>, i32 -> vector<8x512xf32>
    %c1_i32 = arith.constant 1 : i32
    %12 = tpu.dynamic_rotate %7 by %c1_i32 dim 1 : vector<8x512xf32>, i32 -> vector<8x512xf32>
    %c511_i32 = arith.constant 511 : i32
    %13 = tpu.dynamic_rotate %7 by %c511_i32 dim 1 : vector<8x512xf32>, i32 -> vector<8x512xf32>
    %c497_i32 = arith.constant 497 : i32
    %14 = tpu.dynamic_rotate %7 by %c497_i32 dim 1 : vector<8x512xf32>, i32 -> vector<8x512xf32>
    %c496_i32 = arith.constant 496 : i32
    %15 = tpu.dynamic_rotate %7 by %c496_i32 dim 1 : vector<8x512xf32>, i32 -> vector<8x512xf32>
    %c495_i32 = arith.constant 495 : i32
    %16 = tpu.dynamic_rotate %7 by %c495_i32 dim 1 : vector<8x512xf32>, i32 -> vector<8x512xf32>
    %17 = tpu.concatenate %9, %10, %11, %12, %7, %13, %14, %15, %16 in 0 : vector<8x512xf32>, vector<8x512xf32>, vector<8x512xf32>, vector<8x512xf32>, vector<8x512xf32>, vector<8x512xf32>, vector<8x512xf32>, vector<8x512xf32>, vector<8x512xf32> -> vector<72x512xf32>
    %c0_8 = arith.constant 0 : index
    %c0_9 = arith.constant 0 : index
    %18 = vector.load %arg8[%c0_8, %c0_9] : memref<72x512xf32, #tpu.memory_space<vmem>>, vector<72x512xf32>
    %19 = arith.mulf %17, %18 : vector<72x512xf32>
    %c0_10 = arith.constant 0 : index
    %c0_11 = arith.constant 0 : index
    %20 = vector.load %arg4[%c0_10, %c0_11] : memref<8x72xf32, #tpu.memory_space<vmem>>, vector<8x72xf32>
    %cst_12 = arith.constant dense<0.000000e+00> : vector<8x512xf32>
    %21 = tpu.matmul %20, %19, %cst_12 {dimension_numbers = #tpu.dot_dimension_numbers<[1], [0], [0], [1], [0, 0, 1, 1], [], []>} : vector<8x72xf32>, vector<72x512xf32>, vector<8x512xf32> -> vector<8x512xf32>
    %c0_13 = arith.constant 0 : index
    %c0_14 = arith.constant 0 : index
    %22 = vector.load %arg5[%c0_13, %c0_14] : memref<8x1xf32, #tpu.memory_space<vmem>>, vector<8x1xf32>
    %23 = vector.broadcast %22 : vector<8x1xf32> to vector<8x512xf32>
    %24 = arith.addf %21, %23 : vector<8x512xf32>
    %cst_15 = arith.constant 0.000000e+00 : f32
    %25 = vector.broadcast %cst_15 : f32 to vector<8x512xf32>
    %26 = arith.maximumf %24, %25 : vector<8x512xf32>
    %c0_16 = arith.constant 0 : index
    %c0_17 = arith.constant 0 : index
    %27 = vector.load %arg12[%c0_16, %c0_17] : memref<8x512xf32, #tpu.memory_space<vmem>>, vector<8x512xf32>
    tpu.vector_store %arg12[%c0_16, %c0_17], %26 {strides = array<i32>} : memref<8x512xf32, #tpu.memory_space<vmem>>, vector<8x512xf32>,
    %c0_18 = arith.constant 0 : index
    %c0_19 = arith.constant 0 : index
    %28 = vector.load %arg6[%c0_18, %c0_19] : memref<32x8xf32, #tpu.memory_space<vmem>>, vector<32x8xf32>
    %cst_20 = arith.constant dense<0.000000e+00> : vector<32x512xf32>
    %29 = tpu.matmul %28, %26, %cst_20 {dimension_numbers = #tpu.dot_dimension_numbers<[1], [0], [0], [1], [0, 0, 1, 1], [], []>} : vector<32x8xf32>, vector<8x512xf32>, vector<32x512xf32> -> vector<32x512xf32>
    %c0_21 = arith.constant 0 : index
    %c0_22 = arith.constant 0 : index
    %30 = vector.load %arg7[%c0_21, %c0_22] : memref<32x1xf32, #tpu.memory_space<vmem>>, vector<32x1xf32>
    %31 = vector.broadcast %30 : vector<32x1xf32> to vector<32x512xf32>
    %32 = arith.addf %29, %31 : vector<32x512xf32>
    %c0_23 = arith.constant 0 : index
    %c0_24 = arith.constant 0 : index
    %33 = vector.load %arg9[%c0_23, %c0_24] : memref<32x16xf32, #tpu.memory_space<vmem>>, vector<32x16xf32>
    %cst_25 = arith.constant dense<0.000000e+00> : vector<32x512xf32>
    %34 = tpu.matmul %33, %0, %cst_25 {dimension_numbers = #tpu.dot_dimension_numbers<[1], [0], [0], [1], [0, 0, 1, 1], [], []>} : vector<32x16xf32>, vector<16x512xf32>, vector<32x512xf32> -> vector<32x512xf32>
    %c0_26 = arith.constant 0 : index
    %c0_27 = arith.constant 0 : index
    %35 = vector.load %arg10[%c0_26, %c0_27] : memref<32x1xf32, #tpu.memory_space<vmem>>, vector<32x1xf32>
    %36 = vector.broadcast %35 : vector<32x1xf32> to vector<32x512xf32>
    %37 = arith.addf %34, %36 : vector<32x512xf32>
    %38 = arith.addf %32, %37 : vector<32x512xf32>
    %cst_28 = arith.constant 0.000000e+00 : f32
    %39 = vector.broadcast %cst_28 : f32 to vector<32x512xf32>
    %40 = arith.maximumf %38, %39 : vector<32x512xf32>
    %c0_29 = arith.constant 0 : index
    %c0_30 = arith.constant 0 : index
    %41 = vector.load %arg13[%c0_29, %c0_30] : memref<32x512xf32, #tpu.memory_space<vmem>>, vector<32x512xf32>
    tpu.vector_store %arg13[%c0_29, %c0_30], %40 {strides = array<i32>} : memref<32x512xf32, #tpu.memory_space<vmem>>, vector<32x512xf32>,
    return
  }
  func.func @transform_0(%arg0: i32) -> (i32, i32) {
    %c0_i32 = arith.constant 0 : i32
    %c0_i32_0 = arith.constant 0 : i32
    return %c0_i32, %arg0 : i32, i32
  }
  func.func @transform_1(%arg0: i32) -> (i32, i32) {
    %c0_i32 = arith.constant 0 : i32
    %c0_i32_0 = arith.constant 0 : i32
    %c0_i32_1 = arith.constant 0 : i32
    return %c0_i32, %c0_i32_0 : i32, i32
  }
  func.func @transform_2(%arg0: i32) -> (i32, i32) {
    %c0_i32 = arith.constant 0 : i32
    %c0_i32_0 = arith.constant 0 : i32
    %c0_i32_1 = arith.constant 0 : i32
    return %c0_i32, %c0_i32_0 : i32, i32
  }
  func.func @transform_3(%arg0: i32) -> (i32, i32) {
    %c0_i32 = arith.constant 0 : i32
    %c0_i32_0 = arith.constant 0 : i32
    %c0_i32_1 = arith.constant 0 : i32
    return %c0_i32, %c0_i32_0 : i32, i32
  }
  func.func @transform_4(%arg0: i32) -> (i32, i32) {
    %c0_i32 = arith.constant 0 : i32
    %c0_i32_0 = arith.constant 0 : i32
    %c0_i32_1 = arith.constant 0 : i32
    return %c0_i32, %c0_i32_0 : i32, i32
  }
  func.func @transform_5(%arg0: i32) -> (i32, i32) {
    %c0_i32 = arith.constant 0 : i32
    %c0_i32_0 = arith.constant 0 : i32
    %c0_i32_1 = arith.constant 0 : i32
    return %c0_i32, %c0_i32_0 : i32, i32
  }
  func.func @transform_6(%arg0: i32) -> (i32, i32) {
    %c0_i32 = arith.constant 0 : i32
    %c0_i32_0 = arith.constant 0 : i32
    %c0_i32_1 = arith.constant 0 : i32
    return %c0_i32, %c0_i32_0 : i32, i32
  }
  func.func @transform_7(%arg0: i32) -> (i32, i32) {
    %c0_i32 = arith.constant 0 : i32
    %c0_i32_0 = arith.constant 0 : i32
    %c0_i32_1 = arith.constant 0 : i32
    return %c0_i32, %c0_i32_0 : i32, i32
  }
  func.func @transform_8(%arg0: i32) -> (i32, i32) {
    %c0_i32 = arith.constant 0 : i32
    %c0_i32_0 = arith.constant 0 : i32
    %c0_i32_1 = arith.constant 0 : i32
    return %c0_i32, %c0_i32_0 : i32, i32
  }
  func.func @transform_9(%arg0: i32) -> (i32, i32) {
    %c0_i32 = arith.constant 0 : i32
    %c0_i32_0 = arith.constant 0 : i32
    %c0_i32_1 = arith.constant 0 : i32
    return %c0_i32, %c0_i32_0 : i32, i32
  }
  func.func @transform_10(%arg0: i32) -> (i32, i32) {
    %c0_i32 = arith.constant 0 : i32
    %c0_i32_0 = arith.constant 0 : i32
    return %c0_i32, %arg0 : i32, i32
  }
  func.func @transform_11(%arg0: i32) -> (i32, i32) {
    %c0_i32 = arith.constant 0 : i32
    %c0_i32_0 = arith.constant 0 : i32
    return %c0_i32, %arg0 : i32, i32
  }
  func.func @transform_12(%arg0: i32) -> (i32, i32) {
    %c0_i32 = arith.constant 0 : i32
    %c0_i32_0 = arith.constant 0 : i32
    return %c0_i32, %arg0 : i32, i32
  }
}

</mosaic_0001>

<llo_original>
// kernel: tpu_custom_call.1
$region0: #{tpu_custom_call.1}
  #allocation0 [shape = 'u32[]', space=smem, size = 0x4, offset = 0x4, fixed_abs, tag = 'smem constant byte address 0x4 - core index']
  #allocation1 [shape = 'u32[72,128]{1,0:T(1,128)}', space=vmem, size = 0x9000, scoped, tag = 'internal scratch']
  %s0 = inlined_call_operand.vmem [shape: f32[16,512], index: 0, kind: input, shape index: {}]
  %s1 = inlined_call_operand.vmem [shape: f32[8,16], index: 1, kind: input, shape index: {}]
  %s2 = inlined_call_operand.vmem [shape: f32[8,1], index: 2, kind: input, shape index: {}]
  %s3 = inlined_call_operand.vmem [shape: f32[8,72], index: 3, kind: input, shape index: {}]
  %s4 = inlined_call_operand.vmem [shape: f32[8,1], index: 4, kind: input, shape index: {}]
  %s5 = inlined_call_operand.vmem [shape: f32[32,8], index: 5, kind: input, shape index: {}]
  %s6 = inlined_call_operand.vmem [shape: f32[32,1], index: 6, kind: input, shape index: {}]
  %s7 = inlined_call_operand.hbm [shape: f32[72,512], index: 7, kind: input, shape index: {}]
  %s8 = inlined_call_operand.vmem [shape: f32[32,16], index: 8, kind: input, shape index: {}]
  %s9 = inlined_call_operand.vmem [shape: f32[32,1], index: 9, kind: input, shape index: {}]
  %s10 = inlined_call_operand.hbm [shape: f32[8,512], index: 10, kind: output, shape index: {0}]
  %s11 = inlined_call_operand.hbm [shape: f32[8,512], index: 11, kind: output, shape index: {1}]
  %s12 = inlined_call_operand.hbm [shape: f32[32,512], index: 12, kind: output, shape index: {2}]
  %13 = xla_tuple %s10, %s11, %s12
  %s14 = sld [smem:[#allocation0]]
  $region70: #{tpu_custom_call.1} parent=0
    _
  %s16 = ssub.s32 1, %s14
  %s17 = scalar_select 0, %s16, %s14
  $region1: #{tpu_custom_call.1} parent=0
    #allocation2 [shape = 'u8[147456]{0}', space=vmem, size = 0x24000, scoped, tag = 'input window, operand 7, single buffered']
    #allocation3 [shape = 's32[1]{0}', space=sflag, size = 0x4, scoped, tag = 'scoped memory for tpu_custom_call.1']
    #allocation4 [shape = 's32[1]{0}', space=sflag, size = 0x4, scoped, tag = 'scoped memory for tpu_custom_call.1']
    #allocation5 [shape = 'u8[16384]{0}', space=vmem, size = 0x4000, scoped, tag = 'output window, operand 0, single buffered']
    #allocation6 [shape = 'u8[16384]{0}', space=vmem, size = 0x4000, scoped, tag = 'output window, operand 1, single buffered']
    #allocation7 [shape = 's32[1]{0}', space=sflag, size = 0x4, scoped, tag = 'scoped memory for tpu_custom_call.1']
    #allocation8 [shape = 'u8[65536]{0}', space=vmem, size = 0x10000, scoped, tag = 'output window, operand 2, single buffered']
    %18 = vsyncpa [#allocation3], 0
    %19 = vsyncpa [#allocation4], 0
    %20 = vsyncpa [#allocation7], 0
    // Predicated region
    $region2: #{tpu_custom_call.1} parent=1 // pred_check
      _
    $region3: #{tpu_custom_call.1} parent=1 // pred_check_branch
      %22 = sbr.rel (0) target = $region5
    $region4: #{tpu_custom_call.1} parent=1 // pred_region
      _
    $region5: #{tpu_custom_call.1} parent=1 // pred_fallthru
      _
    // Predicated region
    $region6: #{tpu_custom_call.1} parent=1 // pred_check
      _
    $region7: #{tpu_custom_call.1} parent=1 // pred_check_branch
      %24 = sbr.rel (0) target = $region9
    $region8: #{tpu_custom_call.1} parent=1 // pred_region
      _
    $region9: #{tpu_custom_call.1} parent=1 // pred_fallthru
      _
    // Predicated region
    $region10: #{tpu_custom_call.1} parent=1 // pred_check
      _
    $region11: #{tpu_custom_call.1} parent=1 // pred_check_branch
      %26 = sbr.rel (0) target = $region13
    $region12: #{tpu_custom_call.1} parent=1 // pred_region
      _
    $region13: #{tpu_custom_call.1} parent=1 // pred_fallthru
      _
    // Predicated region
    $region14: #{tpu_custom_call.1} parent=1 // pred_check
      _
    $region15: #{tpu_custom_call.1} parent=1 // pred_check_branch
      %28 = sbr.rel (0) target = $region17
    $region16: #{tpu_custom_call.1} parent=1 // pred_region
      _
    $region17: #{tpu_custom_call.1} parent=1 // pred_fallthru
      _
    // Predicated region
    $region18: #{tpu_custom_call.1} parent=1 // pred_check
      _
    $region19: #{tpu_custom_call.1} parent=1 // pred_check_branch
      %30 = sbr.rel (0) target = $region21
    $region20: #{tpu_custom_call.1} parent=1 // pred_region
      _
    $region21: #{tpu_custom_call.1} parent=1 // pred_fallthru
      _
    // Predicated region
    $region22: #{tpu_custom_call.1} parent=1 // pred_check
      _
    $region23: #{tpu_custom_call.1} parent=1 // pred_check_branch
      %32 = sbr.rel (0) target = $region25
    $region24: #{tpu_custom_call.1} parent=1 // pred_region
      _
    $region25: #{tpu_custom_call.1} parent=1 // pred_fallthru
      _
    // Predicated region
    $region26: #{tpu_custom_call.1} parent=1 // pred_check
      _
    $region27: #{tpu_custom_call.1} parent=1 // pred_check_branch
      %34 = sbr.rel (0) target = $region29
    $region28: #{tpu_custom_call.1} parent=1 // pred_region
      _
    $region29: #{tpu_custom_call.1} parent=1 // pred_fallthru
      _
    // Predicated region
    $region30: #{tpu_custom_call.1} parent=1 // pred_check
      _
    $region31: #{tpu_custom_call.1} parent=1 // pred_check_branch
      %36 = sbr.rel (0) target = $region33
    $region32: #{tpu_custom_call.1} parent=1 // pred_region
      %38 = vsyncadd [#allocation3], 0
      %s39 = sshll.u32 %s7, 4
      %s40 = int_to_ptr.hbm [resolvable:$true] %s39
      %s41 = sshll.u32 [#allocation2], 4
      %s42 = int_to_ptr.vmem [resolvable:$true] %s41
      %47 = dma.hbm_to_vmem [thread:$0]  %s40, 4608, %s42, [#allocation3], 512, 512, 32
    $region33: #{tpu_custom_call.1} parent=1 // pred_fallthru
      _
    // Predicated region
    $region34: #{tpu_custom_call.1} parent=1 // pred_check
      _
    $region35: #{tpu_custom_call.1} parent=1 // pred_check_branch
      %49 = sbr.rel (0) target = $region37
    $region36: #{tpu_custom_call.1} parent=1 // pred_region
      _
    $region37: #{tpu_custom_call.1} parent=1 // pred_fallthru
      _
    // Predicated region
    $region38: #{tpu_custom_call.1} parent=1 // pred_check
      _
    $region39: #{tpu_custom_call.1} parent=1 // pred_check_branch
      %51 = sbr.rel (0) target = $region41
    $region40: #{tpu_custom_call.1} parent=1 // pred_region
      _
    $region41: #{tpu_custom_call.1} parent=1 // pred_fallthru
      _
    // Predicated region
    $region42: #{tpu_custom_call.1} parent=1 // pred_check
      _
    $region43: #{tpu_custom_call.1} parent=1 // pred_check_branch
      %53 = sbr.rel (0) target = $region45
    $region44: #{tpu_custom_call.1} parent=1 // pred_region
      %55 = dma.done [#allocation3], 4608
    $region45: #{tpu_custom_call.1} parent=1 // pred_fallthru
      _
    %v56 = vld [vmem:[%s0] sm:$0xff]
    %v57 = vld [vmem:[%s0 + $0x8] sm:$0xff]
    %v58 = vld [vmem:[%s0 + $0x10] sm:$0xff]
    %v59 = vld [vmem:[%s0 + $0x18] sm:$0xff]
    %v60 = vld [vmem:[%s0 + $0x20] sm:$0xff]
    %v61 = vld [vmem:[%s0 + $0x28] sm:$0xff]
    %v62 = vld [vmem:[%s0 + $0x30] sm:$0xff]
    %v63 = vld [vmem:[%s0 + $0x38] sm:$0xff]
    %v64 = vld [vmem:[%s1] sm:$0xff]
    %v65 = vld [vmem:[%s2] sm:$0xff]
    %67 = vset.pattern.permute.xlu0 0
    %68 = vperm.xlu0 %67, %v65
    %v69 = vpop.permute.xlu0 %68
    %vm71 = vcmask 130048
    %v73 = vsel %vm71, %v64, 0
    %75 = vmatpush.msra.mxu0 0.0
    %76 = vmatpush.msra.mxu0 0.0
    %77 = vmatpush.msra.mxu0 0.0
    %78 = vmatpush.msra.mxu0 0.0
    %79 = vmatpush.msra.mxu0 0.0
    %80 = vmatpush.msra.mxu0 0.0
    %81 = vmatpush.msra.mxu0 0.0
    %82 = vmatpush.msra.mxu0 0.0
    %83 = vmatpush.msra.mxu0 0.0
    %84 = vmatpush.msra.mxu0 0.0
    %85 = vmatpush.msra.mxu0 0.0
    %86 = vmatpush.msra.mxu0 0.0
    %87 = vmatpush.msra.mxu0 0.0
    %88 = vmatpush.msra.mxu0 0.0
    %89 = vmatpush.msra.mxu0 %v60
    %90 = vmatpush.msra.mxu0 %v56
    %91 = vmatmul.f32.gmra.mxu0 %v73
    %v92 = vpop.f32.mrf.mxu0
    %v93 = vadd.f32 %v69, %v92
    %94 = vdwg.mxu0
    %95 = vmatpush.msra.mxu0 0.0
    %96 = vmatpush.msra.mxu0 0.0
    %97 = vmatpush.msra.mxu0 0.0
    %98 = vmatpush.msra.mxu0 0.0
    %99 = vmatpush.msra.mxu0 0.0
    %100 = vmatpush.msra.mxu0 0.0
    %101 = vmatpush.msra.mxu0 0.0
    %102 = vmatpush.msra.mxu0 0.0
    %103 = vmatpush.msra.mxu0 0.0
    %104 = vmatpush.msra.mxu0 0.0
    %105 = vmatpush.msra.mxu0 0.0
    %106 = vmatpush.msra.mxu0 0.0
    %107 = vmatpush.msra.mxu0 0.0
    %108 = vmatpush.msra.mxu0 0.0
    %109 = vmatpush.msra.mxu0 %v61
    %110 = vmatpush.msra.mxu0 %v57
    %111 = vmatmul.f32.gmra.mxu0 %v73
    %v112 = vpop.f32.mrf.mxu0
    %v113 = vadd.f32 %v69, %v112
    %114 = vdwg.mxu0
    %115 = vmatpush.msra.mxu0 0.0
    %116 = vmatpush.msra.mxu0 0.0
    %117 = vmatpush.msra.mxu0 0.0
    %118 = vmatpush.msra.mxu0 0.0
    %119 = vmatpush.msra.mxu0 0.0
    %120 = vmatpush.msra.mxu0 0.0
    %121 = vmatpush.msra.mxu0 0.0
    %122 = vmatpush.msra.mxu0 0.0
    %123 = vmatpush.msra.mxu0 0.0
    %124 = vmatpush.msra.mxu0 0.0
    %125 = vmatpush.msra.mxu0 0.0
    %126 = vmatpush.msra.mxu0 0.0
    %127 = vmatpush.msra.mxu0 0.0
    %128 = vmatpush.msra.mxu0 0.0
    %129 = vmatpush.msra.mxu0 %v62
    %130 = vmatpush.msra.mxu0 %v58
    %131 = vmatmul.f32.gmra.mxu0 %v73
    %v132 = vpop.f32.mrf.mxu0
    %v133 = vadd.f32 %v69, %v132
    %134 = vdwg.mxu0
    %135 = vmatpush.msra.mxu0 0.0
    %136 = vmatpush.msra.mxu0 0.0
    %137 = vmatpush.msra.mxu0 0.0
    %138 = vmatpush.msra.mxu0 0.0
    %139 = vmatpush.msra.mxu0 0.0
    %140 = vmatpush.msra.mxu0 0.0
    %141 = vmatpush.msra.mxu0 0.0
    %142 = vmatpush.msra.mxu0 0.0
    %143 = vmatpush.msra.mxu0 0.0
    %144 = vmatpush.msra.mxu0 0.0
    %145 = vmatpush.msra.mxu0 0.0
    %146 = vmatpush.msra.mxu0 0.0
    %147 = vmatpush.msra.mxu0 0.0
    %148 = vmatpush.msra.mxu0 0.0
    %149 = vmatpush.msra.mxu0 %v63
    %150 = vmatpush.msra.mxu0 %v59
    %151 = vmatmul.f32.gmra.mxu0 %v73
    %v152 = vpop.f32.mrf.mxu0
    %v153 = vadd.f32 %v69, %v152
    %154 = vdwg.mxu0
    %v155 = vmax.f32 %v93, 0.0
    %v156 = vmax.f32 %v113, 0.0
    %v157 = vmax.f32 %v133, 0.0
    %v158 = vmax.f32 %v153, 0.0
    %159 = vst [vmem:[#allocation5] sm:$0xff] %v155
    %160 = vst [vmem:[#allocation5 + $0x8] sm:$0xff] %v156
    %161 = vst [vmem:[#allocation5 + $0x10] sm:$0xff] %v157
    %162 = vst [vmem:[#allocation5 + $0x18] sm:$0xff] %v158
    %163 = vrot.lane.b32.xlu0 %v155, 17
    %v164 = vpop.permute.xlu0 %163
    %165 = vrot.lane.b32.xlu0 %v156, 17
    %v166 = vpop.permute.xlu0 %165
    %167 = vrot.lane.b32.xlu0 %v157, 17
    %v168 = vpop.permute.xlu0 %167
    %169 = vrot.lane.b32.xlu0 %v158, 17
    %v170 = vpop.permute.xlu0 %169
    %v171 = vlaneseq
    %v172 = vand.u32 %v171, 127
    %vm173 = vcmp.lt.s32.totalorder %v172, 17
    %v174 = vsel %vm173, %v168, %v170
    %v175 = vsel %vm173, %v166, %v168
    %v176 = vsel %vm173, %v164, %v166
    %v177 = vsel %vm173, %v170, %v164
    %178 = vrot.lane.b32.xlu0 %v155, 16
    %v179 = vpop.permute.xlu0 %178
    %180 = vrot.lane.b32.xlu0 %v156, 16
    %v181 = vpop.permute.xlu0 %180
    %182 = vrot.lane.b32.xlu0 %v157, 16
    %v183 = vpop.permute.xlu0 %182
    %184 = vrot.lane.b32.xlu0 %v158, 16
    %v185 = vpop.permute.xlu0 %184
    %vm186 = vcmp.lt.s32.totalorder %v172, 16
    %v187 = vsel %vm186, %v183, %v185
    %v188 = vsel %vm186, %v181, %v183
    %v189 = vsel %vm186, %v179, %v181
    %v190 = vsel %vm186, %v185, %v179
    %191 = vrot.lane.b32.xlu0 %v155, 15
    %v192 = vpop.permute.xlu0 %191
    %193 = vrot.lane.b32.xlu0 %v156, 15
    %v194 = vpop.permute.xlu0 %193
    %195 = vrot.lane.b32.xlu0 %v157, 15
    %v196 = vpop.permute.xlu0 %195
    %197 = vrot.lane.b32.xlu0 %v158, 15
    %v198 = vpop.permute.xlu0 %197
    %vm199 = vcmp.lt.s32.totalorder %v172, 15
    %v200 = vsel %vm199, %v196, %v198
    %v201 = vsel %vm199, %v194, %v196
    %v202 = vsel %vm199, %v192, %v194
    %v203 = vsel %vm199, %v198, %v192
    %204 = vrot.lane.b32.xlu0 %v155, 1
    %v205 = vpop.permute.xlu0 %204
    %206 = vrot.lane.b32.xlu0 %v156, 1
    %v207 = vpop.permute.xlu0 %206
    %208 = vrot.lane.b32.xlu0 %v157, 1
    %v209 = vpop.permute.xlu0 %208
    %210 = vrot.lane.b32.xlu0 %v158, 1
    %v211 = vpop.permute.xlu0 %210
    %vm212 = vcmp.lt.s32.totalorder %v172, 1
    %v213 = vsel %vm212, %v209, %v211
    %v214 = vsel %vm212, %v207, %v209
    %v215 = vsel %vm212, %v205, %v207
    %v216 = vsel %vm212, %v211, %v205
    %217 = vrot.lane.b32.xlu0 %v155, 127
    %v218 = vpop.permute.xlu0 %217
    %219 = vrot.lane.b32.xlu0 %v156, 127
    %v220 = vpop.permute.xlu0 %219
    %221 = vrot.lane.b32.xlu0 %v157, 127
    %v222 = vpop.permute.xlu0 %221
    %223 = vrot.lane.b32.xlu0 %v158, 127
    %v224 = vpop.permute.xlu0 %223
    %vm225 = vcmp.lt.s32.totalorder %v172, 127
    %v226 = vsel %vm225, %v222, %v224
    %v227 = vsel %vm225, %v220, %v222
    %v228 = vsel %vm225, %v218, %v220
    %v229 = vsel %vm225, %v224, %v218
    %230 = vrot.lane.b32.xlu0 %v155, 113
    %v231 = vpop.permute.xlu0 %230
    %232 = vrot.lane.b32.xlu0 %v156, 113
    %v233 = vpop.permute.xlu0 %232
    %234 = vrot.lane.b32.xlu0 %v157, 113
    %v235 = vpop.permute.xlu0 %234
    %236 = vrot.lane.b32.xlu0 %v158, 113
    %v237 = vpop.permute.xlu0 %236
    %vm238 = vcmp.lt.s32.totalorder %v172, 113
    %v239 = vsel %vm238, %v235, %v237
    %v240 = vsel %vm238, %v233, %v235
    %v241 = vsel %vm238, %v231, %v233
    %v242 = vsel %vm238, %v237, %v231
    %243 = vrot.lane.b32.xlu0 %v155, 112
    %v244 = vpop.permute.xlu0 %243
    %245 = vrot.lane.b32.xlu0 %v156, 112
    %v246 = vpop.permute.xlu0 %245
    %247 = vrot.lane.b32.xlu0 %v157, 112
    %v248 = vpop.permute.xlu0 %247
    %249 = vrot.lane.b32.xlu0 %v158, 112
    %v250 = vpop.permute.xlu0 %249
    %vm251 = vcmp.lt.s32.totalorder %v172, 112
    %v252 = vsel %vm251, %v248, %v250
    %v253 = vsel %vm251, %v246, %v248
    %v254 = vsel %vm251, %v244, %v246
    %v255 = vsel %vm251, %v250, %v244
    %256 = vrot.lane.b32.xlu0 %v155, 111
    %v257 = vpop.permute.xlu0 %256
    %258 = vrot.lane.b32.xlu0 %v156, 111
    %v259 = vpop.permute.xlu0 %258
    %260 = vrot.lane.b32.xlu0 %v157, 111
    %v261 = vpop.permute.xlu0 %260
    %262 = vrot.lane.b32.xlu0 %v158, 111
    %v263 = vpop.permute.xlu0 %262
    %vm264 = vcmp.lt.s32.totalorder %v172, 111
    %v265 = vsel %vm264, %v261, %v263
    %v266 = vsel %vm264, %v259, %v261
    %v267 = vsel %vm264, %v257, %v259
    %v268 = vsel %vm264, %v263, %v257
    %v269 = vld [vmem:[#allocation2] sm:$0xff]
    %v270 = vld [vmem:[#allocation2 + $0x8] sm:$0xff]
    %v271 = vld [vmem:[#allocation2 + $0x10] sm:$0xff]
    %v272 = vld [vmem:[#allocation2 + $0x18] sm:$0xff]
    %v273 = vld [vmem:[#allocation2 + $0x20] sm:$0xff]
    %v274 = vld [vmem:[#allocation2 + $0x28] sm:$0xff]
    %v275 = vld [vmem:[#allocation2 + $0x30] sm:$0xff]
    %v276 = vld [vmem:[#allocation2 + $0x38] sm:$0xff]
    %v277 = vld [vmem:[#allocation2 + $0x40] sm:$0xff]
    %v278 = vld [vmem:[#allocation2 + $0x48] sm:$0xff]
    %v279 = vld [vmem:[#allocation2 + $0x50] sm:$0xff]
    %v280 = vld [vmem:[#allocation2 + $0x58] sm:$0xff]
    %v281 = vld [vmem:[#allocation2 + $0x60] sm:$0xff]
    %v282 = vld [vmem:[#allocation2 + $0x68] sm:$0xff]
    %v283 = vld [vmem:[#allocation2 + $0x70] sm:$0xff]
    %v284 = vld [vmem:[#allocation2 + $0x78] sm:$0xff]
    %v285 = vld [vmem:[#allocation2 + $0x80] sm:$0xff]
    %v286 = vld [vmem:[#allocation2 + $0x88] sm:$0xff]
    %v287 = vld [vmem:[#allocation2 + $0x90] sm:$0xff]
    %v288 = vld [vmem:[#allocation2 + $0x98] sm:$0xff]
    %v289 = vld [vmem:[#allocation2 + $0xa0] sm:$0xff]
    %v290 = vld [vmem:[#allocation2 + $0xa8] sm:$0xff]
    %v291 = vld [vmem:[#allocation2 + $0xb0] sm:$0xff]
    %v292 = vld [vmem:[#allocation2 + $0xb8] sm:$0xff]
    %v293 = vld [vmem:[#allocation2 + $0xc0] sm:$0xff]
    %v294 = vld [vmem:[#allocation2 + $0xc8] sm:$0xff]
    %v295 = vld [vmem:[#allocation2 + $0xd0] sm:$0xff]
    %v296 = vld [vmem:[#allocation2 + $0xd8] sm:$0xff]
    %v297 = vld [vmem:[#allocation2 + $0xe0] sm:$0xff]
    %v298 = vld [vmem:[#allocation2 + $0xe8] sm:$0xff]
    %v299 = vld [vmem:[#allocation2 + $0xf0] sm:$0xff]
    %v300 = vld [vmem:[#allocation2 + $0xf8] sm:$0xff]
    %v301 = vld [vmem:[#allocation2 + $0x100] sm:$0xff]
    %v302 = vld [vmem:[#allocation2 + $0x108] sm:$0xff]
    %v303 = vld [vmem:[#allocation2 + $0x110] sm:$0xff]
    %v304 = vld [vmem:[#allocation2 + $0x118] sm:$0xff]
    %v305 = vmul.f32 %v177, %v269
    %v306 = vmul.f32 %v176, %v270
    %v307 = vmul.f32 %v175, %v271
    %v308 = vmul.f32 %v174, %v272
    %v309 = vmul.f32 %v190, %v273
    %v310 = vmul.f32 %v189, %v274
    %v311 = vmul.f32 %v188, %v275
    %v312 = vmul.f32 %v187, %v276
    %v313 = vmul.f32 %v203, %v277
    %v314 = vmul.f32 %v202, %v278
    %v315 = vmul.f32 %v201, %v279
    %v316 = vmul.f32 %v200, %v280
    %v317 = vmul.f32 %v216, %v281
    %v318 = vmul.f32 %v215, %v282
    %v319 = vmul.f32 %v214, %v283
    %v320 = vmul.f32 %v213, %v284
    %v321 = vmul.f32 %v155, %v285
    %v322 = vmul.f32 %v156, %v286
    %v323 = vmul.f32 %v157, %v287
    %v324 = vmul.f32 %v158, %v288
    %v325 = vmul.f32 %v228, %v289
    %v326 = vmul.f32 %v227, %v290
    %v327 = vmul.f32 %v226, %v291
    %v328 = vmul.f32 %v229, %v292
    %v329 = vmul.f32 %v241, %v293
    %v330 = vmul.f32 %v240, %v294
    %v331 = vmul.f32 %v239, %v295
    %v332 = vmul.f32 %v242, %v296
    %v333 = vmul.f32 %v254, %v297
    %v334 = vmul.f32 %v253, %v298
    %v335 = vmul.f32 %v252, %v299
    %v336 = vmul.f32 %v255, %v300
    %v337 = vmul.f32 %v267, %v301
    %v338 = vmul.f32 %v266, %v302
    %v339 = vmul.f32 %v265, %v303
    %v340 = vmul.f32 %v268, %v304
    %v341 = vld [vmem:[%s3] sm:$0xff]
    %v342 = vld [vmem:[%s4] sm:$0xff]
    %344 = vset.pattern.permute.xlu0 0
    %345 = vperm.xlu0 %344, %v342
    %v346 = vpop.permute.xlu0 %345
    %vm348 = vcmask 588800
    %v350 = vsel %vm348, %v341, 0
    %352 = vmatpush.msra.mxu0 0.0
    %353 = vmatpush.msra.mxu0 0.0
    %354 = vmatpush.msra.mxu0 0.0
    %355 = vmatpush.msra.mxu0 0.0
    %356 = vmatpush.msra.mxu0 0.0
    %357 = vmatpush.msra.mxu0 0.0
    %358 = vmatpush.msra.mxu0 0.0
    %359 = vmatpush.msra.mxu0 %v337
    %360 = vmatpush.msra.mxu0 %v333
    %361 = vmatpush.msra.mxu0 %v329
    %362 = vmatpush.msra.mxu0 %v325
    %363 = vmatpush.msra.mxu0 %v321
    %364 = vmatpush.msra.mxu0 %v317
    %365 = vmatpush.msra.mxu0 %v313
    %366 = vmatpush.msra.mxu0 %v309
    %367 = vmatpush.msra.mxu0 %v305
    %368 = vmatmul.f32.gmra.mxu0 %v350
    %v369 = vpop.f32.mrf.mxu0
    %v370 = vadd.f32 %v346, %v369
    %371 = vdwg.mxu0
    %372 = vmatpush.msra.mxu0 0.0
    %373 = vmatpush.msra.mxu0 0.0
    %374 = vmatpush.msra.mxu0 0.0
    %375 = vmatpush.msra.mxu0 0.0
    %376 = vmatpush.msra.mxu0 0.0
    %377 = vmatpush.msra.mxu0 0.0
    %378 = vmatpush.msra.mxu0 0.0
    %379 = vmatpush.msra.mxu0 %v338
    %380 = vmatpush.msra.mxu0 %v334
    %381 = vmatpush.msra.mxu0 %v330
    %382 = vmatpush.msra.mxu0 %v326
    %383 = vmatpush.msra.mxu0 %v322
    %384 = vmatpush.msra.mxu0 %v318
    %385 = vmatpush.msra.mxu0 %v314
    %386 = vmatpush.msra.mxu0 %v310
    %387 = vmatpush.msra.mxu0 %v306
    %388 = vmatmul.f32.gmra.mxu0 %v350
    %v389 = vpop.f32.mrf.mxu0
    %v390 = vadd.f32 %v346, %v389
    %391 = vdwg.mxu0
    %392 = vmatpush.msra.mxu0 0.0
    %393 = vmatpush.msra.mxu0 0.0
    %394 = vmatpush.msra.mxu0 0.0
    %395 = vmatpush.msra.mxu0 0.0
    %396 = vmatpush.msra.mxu0 0.0
    %397 = vmatpush.msra.mxu0 0.0
    %398 = vmatpush.msra.mxu0 0.0
    %399 = vmatpush.msra.mxu0 %v339
    %400 = vmatpush.msra.mxu0 %v335
    %401 = vmatpush.msra.mxu0 %v331
    %402 = vmatpush.msra.mxu0 %v327
    %403 = vmatpush.msra.mxu0 %v323
    %404 = vmatpush.msra.mxu0 %v319
    %405 = vmatpush.msra.mxu0 %v315
    %406 = vmatpush.msra.mxu0 %v311
    %407 = vmatpush.msra.mxu0 %v307
    %408 = vmatmul.f32.gmra.mxu0 %v350
    %v409 = vpop.f32.mrf.mxu0
    %v410 = vadd.f32 %v346, %v409
    %411 = vdwg.mxu0
    %412 = vmatpush.msra.mxu0 0.0
    %413 = vmatpush.msra.mxu0 0.0
    %414 = vmatpush.msra.mxu0 0.0
    %415 = vmatpush.msra.mxu0 0.0
    %416 = vmatpush.msra.mxu0 0.0
    %417 = vmatpush.msra.mxu0 0.0
    %418 = vmatpush.msra.mxu0 0.0
    %419 = vmatpush.msra.mxu0 %v340
    %420 = vmatpush.msra.mxu0 %v336
    %421 = vmatpush.msra.mxu0 %v332
    %422 = vmatpush.msra.mxu0 %v328
    %423 = vmatpush.msra.mxu0 %v324
    %424 = vmatpush.msra.mxu0 %v320
    %425 = vmatpush.msra.mxu0 %v316
    %426 = vmatpush.msra.mxu0 %v312
    %427 = vmatpush.msra.mxu0 %v308
    %428 = vmatmul.f32.gmra.mxu0 %v350
    %v429 = vpop.f32.mrf.mxu0
    %v430 = vadd.f32 %v346, %v429
    %431 = vdwg.mxu0
    %v432 = vmax.f32 %v370, 0.0
    %v433 = vmax.f32 %v390, 0.0
    %v434 = vmax.f32 %v410, 0.0
    %v435 = vmax.f32 %v430, 0.0
    %436 = vst [vmem:[#allocation6] sm:$0xff] %v432
    %437 = vst [vmem:[#allocation6 + $0x8] sm:$0xff] %v433
    %438 = vst [vmem:[#allocation6 + $0x10] sm:$0xff] %v434
    %439 = vst [vmem:[#allocation6 + $0x18] sm:$0xff] %v435
    %v440 = vld [vmem:[%s5] sm:$0xff]
    %v441 = vld [vmem:[%s5 + $0x8] sm:$0xff]
    %v442 = vld [vmem:[%s5 + $0x10] sm:$0xff]
    %v443 = vld [vmem:[%s5 + $0x18] sm:$0xff]
    %v444 = vld [vmem:[%s6] sm:$0xff]
    %v445 = vld [vmem:[%s6 + $0x8] sm:$0xff]
    %v446 = vld [vmem:[%s6 + $0x10] sm:$0xff]
    %v447 = vld [vmem:[%s6 + $0x18] sm:$0xff]
    %449 = vset.pattern.permute.xlu0 0
    %450 = vperm.xlu0 %449, %v444
    %v451 = vpop.permute.xlu0 %450
    %454 = vset.pattern.permute.xlu0 0
    %455 = vperm.xlu0 %454, %v445
    %v456 = vpop.permute.xlu0 %455
    %459 = vset.pattern.permute.xlu0 0
    %460 = vperm.xlu0 %459, %v446
    %v461 = vpop.permute.xlu0 %460
    %464 = vset.pattern.permute.xlu0 0
    %465 = vperm.xlu0 %464, %v447
    %v466 = vpop.permute.xlu0 %465
    %vm468 = vcmask 64512
    %v470 = vsel %vm468, %v440, 0
    %v473 = vsel %vm468, %v441, 0
    %v476 = vsel %vm468, %v442, 0
    %v479 = vsel %vm468, %v443, 0
    %481 = vmatpush.msra.mxu0 0.0
    %482 = vmatpush.msra.mxu0 0.0
    %483 = vmatpush.msra.mxu0 0.0
    %484 = vmatpush.msra.mxu0 0.0
    %485 = vmatpush.msra.mxu0 0.0
    %486 = vmatpush.msra.mxu0 0.0
    %487 = vmatpush.msra.mxu0 0.0
    %488 = vmatpush.msra.mxu0 0.0
    %489 = vmatpush.msra.mxu0 0.0
    %490 = vmatpush.msra.mxu0 0.0
    %491 = vmatpush.msra.mxu0 0.0
    %492 = vmatpush.msra.mxu0 0.0
    %493 = vmatpush.msra.mxu0 0.0
    %494 = vmatpush.msra.mxu0 0.0
    %495 = vmatpush.msra.mxu0 0.0
    %496 = vmatpush.msra.mxu0 %v432
    %497 = vmatmul.f32.gmra.mxu0 %v470
    %v498 = vpop.f32.mrf.mxu0
    %v499 = vadd.f32 %v451, %v498
    %500 = vmatmul.f32.gmra.mxu0 %v473
    %v501 = vpop.f32.mrf.mxu0
    %v502 = vadd.f32 %v456, %v501
    %503 = vmatmul.f32.gmra.mxu0 %v476
    %v504 = vpop.f32.mrf.mxu0
    %v505 = vadd.f32 %v461, %v504
    %506 = vmatmul.f32.gmra.mxu0 %v479
    %v507 = vpop.f32.mrf.mxu0
    %v508 = vadd.f32 %v466, %v507
    %509 = vdwg.mxu0
    %510 = vmatpush.msra.mxu0 0.0
    %511 = vmatpush.msra.mxu0 0.0
    %512 = vmatpush.msra.mxu0 0.0
    %513 = vmatpush.msra.mxu0 0.0
    %514 = vmatpush.msra.mxu0 0.0
    %515 = vmatpush.msra.mxu0 0.0
    %516 = vmatpush.msra.mxu0 0.0
    %517 = vmatpush.msra.mxu0 0.0
    %518 = vmatpush.msra.mxu0 0.0
    %519 = vmatpush.msra.mxu0 0.0
    %520 = vmatpush.msra.mxu0 0.0
    %521 = vmatpush.msra.mxu0 0.0
    %522 = vmatpush.msra.mxu0 0.0
    %523 = vmatpush.msra.mxu0 0.0
    %524 = vmatpush.msra.mxu0 0.0
    %525 = vmatpush.msra.mxu0 %v433
    %526 = vmatmul.f32.gmra.mxu0 %v470
    %v527 = vpop.f32.mrf.mxu0
    %v528 = vadd.f32 %v451, %v527
    %529 = vmatmul.f32.gmra.mxu0 %v473
    %v530 = vpop.f32.mrf.mxu0
    %v531 = vadd.f32 %v456, %v530
    %532 = vmatmul.f32.gmra.mxu0 %v476
    %v533 = vpop.f32.mrf.mxu0
    %v534 = vadd.f32 %v461, %v533
    %535 = vmatmul.f32.gmra.mxu0 %v479
    %v536 = vpop.f32.mrf.mxu0
    %v537 = vadd.f32 %v466, %v536
    %538 = vdwg.mxu0
    %539 = vmatpush.msra.mxu0 0.0
    %540 = vmatpush.msra.mxu0 0.0
    %541 = vmatpush.msra.mxu0 0.0
    %542 = vmatpush.msra.mxu0 0.0
    %543 = vmatpush.msra.mxu0 0.0
    %544 = vmatpush.msra.mxu0 0.0
    %545 = vmatpush.msra.mxu0 0.0
    %546 = vmatpush.msra.mxu0 0.0
    %547 = vmatpush.msra.mxu0 0.0
    %548 = vmatpush.msra.mxu0 0.0
    %549 = vmatpush.msra.mxu0 0.0
    %550 = vmatpush.msra.mxu0 0.0
    %551 = vmatpush.msra.mxu0 0.0
    %552 = vmatpush.msra.mxu0 0.0
    %553 = vmatpush.msra.mxu0 0.0
    %554 = vmatpush.msra.mxu0 %v434
    %555 = vmatmul.f32.gmra.mxu0 %v470
    %v556 = vpop.f32.mrf.mxu0
    %v557 = vadd.f32 %v451, %v556
    %558 = vmatmul.f32.gmra.mxu0 %v473
    %v559 = vpop.f32.mrf.mxu0
    %v560 = vadd.f32 %v456, %v559
    %561 = vmatmul.f32.gmra.mxu0 %v476
    %v562 = vpop.f32.mrf.mxu0
    %v563 = vadd.f32 %v461, %v562
    %564 = vmatmul.f32.gmra.mxu0 %v479
    %v565 = vpop.f32.mrf.mxu0
    %v566 = vadd.f32 %v466, %v565
    %567 = vdwg.mxu0
    %568 = vmatpush.msra.mxu0 0.0
    %569 = vmatpush.msra.mxu0 0.0
    %570 = vmatpush.msra.mxu0 0.0
    %571 = vmatpush.msra.mxu0 0.0
    %572 = vmatpush.msra.mxu0 0.0
    %573 = vmatpush.msra.mxu0 0.0
    %574 = vmatpush.msra.mxu0 0.0
    %575 = vmatpush.msra.mxu0 0.0
    %576 = vmatpush.msra.mxu0 0.0
    %577 = vmatpush.msra.mxu0 0.0
    %578 = vmatpush.msra.mxu0 0.0
    %579 = vmatpush.msra.mxu0 0.0
    %580 = vmatpush.msra.mxu0 0.0
    %581 = vmatpush.msra.mxu0 0.0
    %582 = vmatpush.msra.mxu0 0.0
    %583 = vmatpush.msra.mxu0 %v435
    %584 = vmatmul.f32.gmra.mxu0 %v470
    %v585 = vpop.f32.mrf.mxu0
    %v586 = vadd.f32 %v451, %v585
    %587 = vmatmul.f32.gmra.mxu0 %v473
    %v588 = vpop.f32.mrf.mxu0
    %v589 = vadd.f32 %v456, %v588
    %590 = vmatmul.f32.gmra.mxu0 %v476
    %v591 = vpop.f32.mrf.mxu0
    %v592 = vadd.f32 %v461, %v591
    %593 = vmatmul.f32.gmra.mxu0 %v479
    %v594 = vpop.f32.mrf.mxu0
    %v595 = vadd.f32 %v466, %v594
    %596 = vdwg.mxu0
    %v597 = vld [vmem:[%s8] sm:$0xff]
    %v598 = vld [vmem:[%s8 + $0x8] sm:$0xff]
    %v599 = vld [vmem:[%s8 + $0x10] sm:$0xff]
    %v600 = vld [vmem:[%s8 + $0x18] sm:$0xff]
    %v601 = vld [vmem:[%s9] sm:$0xff]
    %v602 = vld [vmem:[%s9 + $0x8] sm:$0xff]
    %v603 = vld [vmem:[%s9 + $0x10] sm:$0xff]
    %v604 = vld [vmem:[%s9 + $0x18] sm:$0xff]
    %606 = vset.pattern.permute.xlu0 0
    %607 = vperm.xlu0 %606, %v601
    %v608 = vpop.permute.xlu0 %607
    %611 = vset.pattern.permute.xlu0 0
    %612 = vperm.xlu0 %611, %v602
    %v613 = vpop.permute.xlu0 %612
    %616 = vset.pattern.permute.xlu0 0
    %617 = vperm.xlu0 %616, %v603
    %v618 = vpop.permute.xlu0 %617
    %621 = vset.pattern.permute.xlu0 0
    %622 = vperm.xlu0 %621, %v604
    %v623 = vpop.permute.xlu0 %622
    %v626 = vsel %vm71, %v597, 0
    %v629 = vsel %vm71, %v598, 0
    %v632 = vsel %vm71, %v599, 0
    %v635 = vsel %vm71, %v600, 0
    %637 = vmatpush.msra.mxu0 0.0
    %638 = vmatpush.msra.mxu0 0.0
    %639 = vmatpush.msra.mxu0 0.0
    %640 = vmatpush.msra.mxu0 0.0
    %641 = vmatpush.msra.mxu0 0.0
    %642 = vmatpush.msra.mxu0 0.0
    %643 = vmatpush.msra.mxu0 0.0
    %644 = vmatpush.msra.mxu0 0.0
    %645 = vmatpush.msra.mxu0 0.0
    %646 = vmatpush.msra.mxu0 0.0
    %647 = vmatpush.msra.mxu0 0.0
    %648 = vmatpush.msra.mxu0 0.0
    %649 = vmatpush.msra.mxu0 0.0
    %650 = vmatpush.msra.mxu0 0.0
    %651 = vmatpush.msra.mxu0 %v60
    %652 = vmatpush.msra.mxu0 %v56
    %653 = vmatmul.f32.gmra.mxu0 %v626
    %v654 = vpop.f32.mrf.mxu0
    %v655 = vadd.f32 %v608, %v654
    %656 = vmatmul.f32.gmra.mxu0 %v629
    %v657 = vpop.f32.mrf.mxu0
    %v658 = vadd.f32 %v613, %v657
    %659 = vmatmul.f32.gmra.mxu0 %v632
    %v660 = vpop.f32.mrf.mxu0
    %v661 = vadd.f32 %v618, %v660
    %662 = vmatmul.f32.gmra.mxu0 %v635
    %v663 = vpop.f32.mrf.mxu0
    %v664 = vadd.f32 %v623, %v663
    %665 = vdwg.mxu0
    %666 = vmatpush.msra.mxu0 0.0
    %667 = vmatpush.msra.mxu0 0.0
    %668 = vmatpush.msra.mxu0 0.0
    %669 = vmatpush.msra.mxu0 0.0
    %670 = vmatpush.msra.mxu0 0.0
    %671 = vmatpush.msra.mxu0 0.0
    %672 = vmatpush.msra.mxu0 0.0
    %673 = vmatpush.msra.mxu0 0.0
    %674 = vmatpush.msra.mxu0 0.0
    %675 = vmatpush.msra.mxu0 0.0
    %676 = vmatpush.msra.mxu0 0.0
    %677 = vmatpush.msra.mxu0 0.0
    %678 = vmatpush.msra.mxu0 0.0
    %679 = vmatpush.msra.mxu0 0.0
    %680 = vmatpush.msra.mxu0 %v61
    %681 = vmatpush.msra.mxu0 %v57
    %682 = vmatmul.f32.gmra.mxu0 %v626
    %v683 = vpop.f32.mrf.mxu0
    %v684 = vadd.f32 %v608, %v683
    %685 = vmatmul.f32.gmra.mxu0 %v629
    %v686 = vpop.f32.mrf.mxu0
    %v687 = vadd.f32 %v613, %v686
    %688 = vmatmul.f32.gmra.mxu0 %v632
    %v689 = vpop.f32.mrf.mxu0
    %v690 = vadd.f32 %v618, %v689
    %691 = vmatmul.f32.gmra.mxu0 %v635
    %v692 = vpop.f32.mrf.mxu0
    %v693 = vadd.f32 %v623, %v692
    %694 = vdwg.mxu0
    %695 = vmatpush.msra.mxu0 0.0
    %696 = vmatpush.msra.mxu0 0.0
    %697 = vmatpush.msra.mxu0 0.0
    %698 = vmatpush.msra.mxu0 0.0
    %699 = vmatpush.msra.mxu0 0.0
    %700 = vmatpush.msra.mxu0 0.0
    %701 = vmatpush.msra.mxu0 0.0
    %702 = vmatpush.msra.mxu0 0.0
    %703 = vmatpush.msra.mxu0 0.0
    %704 = vmatpush.msra.mxu0 0.0
    %705 = vmatpush.msra.mxu0 0.0
    %706 = vmatpush.msra.mxu0 0.0
    %707 = vmatpush.msra.mxu0 0.0
    %708 = vmatpush.msra.mxu0 0.0
    %709 = vmatpush.msra.mxu0 %v62
    %710 = vmatpush.msra.mxu0 %v58
    %711 = vmatmul.f32.gmra.mxu0 %v626
    %v712 = vpop.f32.mrf.mxu0
    %v713 = vadd.f32 %v608, %v712
    %714 = vmatmul.f32.gmra.mxu0 %v629
    %v715 = vpop.f32.mrf.mxu0
    %v716 = vadd.f32 %v613, %v715
    %717 = vmatmul.f32.gmra.mxu0 %v632
    %v718 = vpop.f32.mrf.mxu0
    %v719 = vadd.f32 %v618, %v718
    %720 = vmatmul.f32.gmra.mxu0 %v635
    %v721 = vpop.f32.mrf.mxu0
    %v722 = vadd.f32 %v623, %v721
    %723 = vdwg.mxu0
    %724 = vmatpush.msra.mxu0 0.0
    %725 = vmatpush.msra.mxu0 0.0
    %726 = vmatpush.msra.mxu0 0.0
    %727 = vmatpush.msra.mxu0 0.0
    %728 = vmatpush.msra.mxu0 0.0
    %729 = vmatpush.msra.mxu0 0.0
    %730 = vmatpush.msra.mxu0 0.0
    %731 = vmatpush.msra.mxu0 0.0
    %732 = vmatpush.msra.mxu0 0.0
    %733 = vmatpush.msra.mxu0 0.0
    %734 = vmatpush.msra.mxu0 0.0
    %735 = vmatpush.msra.mxu0 0.0
    %736 = vmatpush.msra.mxu0 0.0
    %737 = vmatpush.msra.mxu0 0.0
    %738 = vmatpush.msra.mxu0 %v63
    %739 = vmatpush.msra.mxu0 %v59
    %740 = vmatmul.f32.gmra.mxu0 %v626
    %v741 = vpop.f32.mrf.mxu0
    %v742 = vadd.f32 %v608, %v741
    %743 = vmatmul.f32.gmra.mxu0 %v629
    %v744 = vpop.f32.mrf.mxu0
    %v745 = vadd.f32 %v613, %v744
    %746 = vmatmul.f32.gmra.mxu0 %v632
    %v747 = vpop.f32.mrf.mxu0
    %v748 = vadd.f32 %v618, %v747
    %749 = vmatmul.f32.gmra.mxu0 %v635
    %v750 = vpop.f32.mrf.mxu0
    %v751 = vadd.f32 %v623, %v750
    %752 = vdwg.mxu0
    %v753 = vadd.f32 %v499, %v655
    %v754 = vadd.f32 %v528, %v684
    %v755 = vadd.f32 %v557, %v713
    %v756 = vadd.f32 %v586, %v742
    %v757 = vadd.f32 %v502, %v658
    %v758 = vadd.f32 %v531, %v687
    %v759 = vadd.f32 %v560, %v716
    %v760 = vadd.f32 %v589, %v745
    %v761 = vadd.f32 %v505, %v661
    %v762 = vadd.f32 %v534, %v690
    %v763 = vadd.f32 %v563, %v719
    %v764 = vadd.f32 %v592, %v748
    %v765 = vadd.f32 %v508, %v664
    %v766 = vadd.f32 %v537, %v693
    %v767 = vadd.f32 %v566, %v722
    %v768 = vadd.f32 %v595, %v751
    %v769 = vmax.f32 %v753, 0.0
    %v770 = vmax.f32 %v754, 0.0
    %v771 = vmax.f32 %v755, 0.0
    %v772 = vmax.f32 %v756, 0.0
    %v773 = vmax.f32 %v757, 0.0
    %v774 = vmax.f32 %v758, 0.0
    %v775 = vmax.f32 %v759, 0.0
    %v776 = vmax.f32 %v760, 0.0
    %v777 = vmax.f32 %v761, 0.0
    %v778 = vmax.f32 %v762, 0.0
    %v779 = vmax.f32 %v763, 0.0
    %v780 = vmax.f32 %v764, 0.0
    %v781 = vmax.f32 %v765, 0.0
    %v782 = vmax.f32 %v766, 0.0
    %v783 = vmax.f32 %v767, 0.0
    %v784 = vmax.f32 %v768, 0.0
    %785 = vst [vmem:[#allocation8] sm:$0xff] %v769
    %786 = vst [vmem:[#allocation8 + $0x8] sm:$0xff] %v770
    %787 = vst [vmem:[#allocation8 + $0x10] sm:$0xff] %v771
    %788 = vst [vmem:[#allocation8 + $0x18] sm:$0xff] %v772
    %789 = vst [vmem:[#allocation8 + $0x20] sm:$0xff] %v773
    %790 = vst [vmem:[#allocation8 + $0x28] sm:$0xff] %v774
    %791 = vst [vmem:[#allocation8 + $0x30] sm:$0xff] %v775
    %792 = vst [vmem:[#allocation8 + $0x38] sm:$0xff] %v776
    %793 = vst [vmem:[#allocation8 + $0x40] sm:$0xff] %v777
    %794 = vst [vmem:[#allocation8 + $0x48] sm:$0xff] %v778
    %795 = vst [vmem:[#allocation8 + $0x50] sm:$0xff] %v779
    %796 = vst [vmem:[#allocation8 + $0x58] sm:$0xff] %v780
    %797 = vst [vmem:[#allocation8 + $0x60] sm:$0xff] %v781
    %798 = vst [vmem:[#allocation8 + $0x68] sm:$0xff] %v782
    %799 = vst [vmem:[#allocation8 + $0x70] sm:$0xff] %v783
    %800 = vst [vmem:[#allocation8 + $0x78] sm:$0xff] %v784
    // Predicated region
    $region46: #{tpu_custom_call.1} parent=1 // pred_check
      _
    $region47: #{tpu_custom_call.1} parent=1 // pred_check_branch
      %802 = sbr.rel (0) target = $region49
    $region48: #{tpu_custom_call.1} parent=1 // pred_region
      %804 = vsyncadd [#allocation4], 0
      %s806 = sshll.u32 [#allocation5], 4
      %s807 = int_to_ptr.vmem [resolvable:$true] %s806
      %s808 = sshll.u32 %s10, 4
      %s809 = int_to_ptr.hbm [resolvable:$true] %s808
      %811 = dma.vmem_to_hbm [thread:$0]  %s807, 512, %s809, [#allocation4]
    $region49: #{tpu_custom_call.1} parent=1 // pred_fallthru
      _
    // Predicated region
    $region50: #{tpu_custom_call.1} parent=1 // pred_check
      _
    $region51: #{tpu_custom_call.1} parent=1 // pred_check_branch
      %813 = sbr.rel (0) target = $region53
    $region52: #{tpu_custom_call.1} parent=1 // pred_region
      %815 = vsyncadd [#allocation7], 0
      %s817 = sshll.u32 [#allocation6], 4
      %s818 = int_to_ptr.vmem [resolvable:$true] %s817
      %s819 = sshll.u32 %s11, 4
      %s820 = int_to_ptr.hbm [resolvable:$true] %s819
      %822 = dma.vmem_to_hbm [thread:$0]  %s818, 512, %s820, [#allocation7]
    $region53: #{tpu_custom_call.1} parent=1 // pred_fallthru
      _
    // Predicated region
    $region54: #{tpu_custom_call.1} parent=1 // pred_check
      _
    $region55: #{tpu_custom_call.1} parent=1 // pred_check_branch
      %824 = sbr.rel (0) target = $region57
    $region56: #{tpu_custom_call.1} parent=1 // pred_region
      %826 = vsyncadd [#allocation7], 0
      %s827 = sshll.u32 [#allocation8], 4
      %s828 = int_to_ptr.vmem [resolvable:$true] %s827
      %s829 = sshll.u32 %s12, 4
      %s830 = int_to_ptr.hbm [resolvable:$true] %s829
      %835 = dma.vmem_to_hbm [thread:$0]  %s828, 2048, %s830, [#allocation7], 512, 512, 32
    $region57: #{tpu_custom_call.1} parent=1 // pred_fallthru
      _
    // Predicated region
    $region58: #{tpu_custom_call.1} parent=1 // pred_check
      _
    $region59: #{tpu_custom_call.1} parent=1 // pred_check_branch
      %837 = sbr.rel (0) target = $region61
    $region60: #{tpu_custom_call.1} parent=1 // pred_region
      %839 = dma.done [#allocation4], 512
    $region61: #{tpu_custom_call.1} parent=1 // pred_fallthru
      _
    // Predicated region
    $region62: #{tpu_custom_call.1} parent=1 // pred_check
      _
    $region63: #{tpu_custom_call.1} parent=1 // pred_check_branch
      %841 = sbr.rel (0) target = $region65
    $region64: #{tpu_custom_call.1} parent=1 // pred_region
      %843 = dma.done [#allocation7], 512
    $region65: #{tpu_custom_call.1} parent=1 // pred_fallthru
      _
    // Predicated region
    $region66: #{tpu_custom_call.1} parent=1 // pred_check
      _
    $region67: #{tpu_custom_call.1} parent=1 // pred_check_branch
      %845 = sbr.rel (0) target = $region69
    $region68: #{tpu_custom_call.1} parent=1 // pred_region
      %847 = dma.done [#allocation7], 2048
    $region69: #{tpu_custom_call.1} parent=1 // pred_fallthru
      _
    %848 = vsyncpa [#allocation3], 1
    %849 = vsyncpa [#allocation4], 1
    %850 = vsyncpa [#allocation7], 1

</llo_original>
